<compile_context>
chip_gen: v5e
topology: v5e:2x2
jax: 0.10.0
libtpu: 0.0.40
codegen_flags: <defaults>
</compile_context>

<pallas_src>
import math

import jax
import jax.numpy as jnp
from jax.experimental import pallas as pl
from jax.experimental.pallas import tpu as pltpu


def _make_attn_kernel(num_heads: int, head_dim: int, compute_dtype):
    nh, d = num_heads, head_dim

    def kernel(x_ref, wqkv_ref, bqkv_ref, wo_ref, bo_ref, o_ref):
        BB, S, H = x_ref.shape          # static block shape
        N = BB * S

        # ---- fused QKV projection: one MXU matmul, output width 3H (f32 accumulate) ----
        x = x_ref[...].reshape(N, H).astype(compute_dtype)
        qkv = jnp.dot(x, wqkv_ref[...], preferred_element_type=jnp.float32)
        qkv = qkv + bqkv_ref[...]                                   # [N, 3H] f32

        # ---- head split: [N, H] -> [BB*nh, S, d] --------------------------------------
        # Static lane slices + stack on a new major axis (safe relayouts only).
        def to_heads(t):                                            # t: [N, H] f32
            parts = [t[:, h * d:(h + 1) * d].reshape(BB, 1, S, d) for h in range(nh)]
            stacked = parts[0] if nh == 1 else jnp.concatenate(parts, axis=1)
            return stacked.reshape(BB * nh, S, d).astype(compute_dtype)

        q = to_heads(qkv[:, 0 * H:1 * H])        # 1/sqrt(d) already folded into W_q/b_q
        k = to_heads(qkv[:, 1 * H:2 * H])
        v = to_heads(qkv[:, 2 * H:3 * H])

        # ---- batched attention over (batch*heads): no .T, no per-head loop ------------
        scores = jnp.einsum('bqd,bkd->bqk', q, k,
                            preferred_element_type=jnp.float32)     # [BB*nh, S, S] f32
        m = jnp.max(scores, axis=-1, keepdims=True)                 # stable softmax (f32)
        e = jnp.exp(scores - m)
        denom = jnp.sum(e, axis=-1, keepdims=True)
        probs = e * pl.reciprocal(denom, approx=True)               # divide -> EUP slot
        # attn_dropout has p=0.0 -> identity
        ctx = jnp.einsum('bqk,bkd->bqd', probs.astype(compute_dtype), v,
                         preferred_element_type=jnp.float32)        # [BB*nh, S, d] f32

        # ---- head merge: [BB*nh, S, d] -> [N, H] (permute+reshape fusion) -------------
        c4 = ctx.reshape(BB, nh, S, d)
        merged = (jnp.concatenate([c4[:, h] for h in range(nh)], axis=-1)
                  if nh > 1 else c4[:, 0])                          # [BB, S, H] f32
        ctx2 = merged.reshape(N, H).astype(compute_dtype)

        # ---- output projection ---------------------------------------------------------
        out = jnp.dot(ctx2, wo_ref[...], preferred_element_type=jnp.float32)
        out = out + bo_ref[...]                                     # [N, H] f32
        # proj_dropout has p=0.0 -> identity
        o_ref[...] = out.reshape(BB, S, H).astype(o_ref.dtype)

    return kernel


def gatn_attention(hidden_states, params, num_heads, *,
                   batch_block=None, compute_dtype=None):
    """Pallas implementation of GATNAttention.forward.

    Returns (attention_output, weights); weights is None since vis=False.
    compute_dtype controls the dtype of the MXU operands (e.g. jnp.bfloat16);
    accumulation, biases and softmax statistics stay in float32.
    """
    B, S, H = hidden_states.shape
    assert H % num_heads == 0
    head_dim = H // num_heads
    if compute_dtype is None:
        compute_dtype = hidden_states.dtype
    if batch_block is None:
        batch_block = B
    assert B % batch_block == 0

    wq, bq, wk, bk, wv, bv, wo, bo = params
    scale = 1.0 / math.sqrt(head_dim)

    # Fuse QKV into a single [H, 3H] weight / [1, 3H] bias and fold the attention scale
    # into the Q projection.  Weights are cast to compute_dtype once here (halves their
    # HBM/VMEM footprint when bf16); biases stay f32 (added to f32 accumulators).
    wqkv = jnp.concatenate([wq * scale, wk, wv], axis=1).astype(compute_dtype)
    bqkv = jnp.concatenate([bq * scale, bk, bv], axis=1).astype(jnp.float32)
    wo_c = wo.astype(compute_dtype)
    bo_c = bo.astype(jnp.float32)

    kernel = _make_attn_kernel(num_heads, head_dim, compute_dtype)

    out = pl.pallas_call(
        kernel,
        out_shape=jax.ShapeDtypeStruct((B, S, H), hidden_states.dtype),
        grid_spec=pltpu.PrefetchScalarGridSpec(
            num_scalar_prefetch=0,
            grid=(B // batch_block,),
            in_specs=[
                pl.BlockSpec((batch_block, S, H), lambda b: (b, 0, 0)),  # x
                pl.BlockSpec((H, 3 * H), lambda b: (0, 0)),              # W_qkv (fused)
                pl.BlockSpec((1, 3 * H), lambda b: (0, 0)),              # b_qkv (fused)
                pl.BlockSpec((H, H), lambda b: (0, 0)),                  # W_out
                pl.BlockSpec((1, H), lambda b: (0, 0)),                  # b_out
            ],
            out_specs=pl.BlockSpec((batch_block, S, H), lambda b: (b, 0, 0)),
        ),
        compiler_params=pltpu.CompilerParams(
            dimension_semantics=("parallel",)),
    )(hidden_states, wqkv, bqkv, wo_c, bo_c)

    return out, None  # vis=False -> weights is None


def _reference(hidden_states, params, num_heads):
    """Pure-JAX reference matching the PyTorch forward semantics (f32)."""
    B, S, H = hidden_states.shape
    d = H // num_heads
    wq, bq, wk, bk, wv, bv, wo, bo = params
    x = hidden_states.astype(jnp.float32)

    def split_heads(t):  # [B,S,H] -> [B,nh,S,d]
        return t.reshape(B, S, num_heads, d).transpose(0, 2, 1, 3)

    q = split_heads(x @ wq + bq[0])
    k = split_heads(x @ wk + bk[0])
    v = split_heads(x @ wv + bv[0])
    scores = jnp.einsum('bhqd,bhkd->bhqk', q, k) / math.sqrt(d)
    probs = jax.nn.softmax(scores, axis=-1)
    ctx = jnp.einsum('bhqk,bhkd->bhqd', probs, v)
    ctx = ctx.transpose(0, 2, 1, 3).reshape(B, S, H)
    return ctx @ wo + bo[0]


def init_params(key, hidden_size):
    """Deterministic synthetic parameter init (shapes per GATNAttention.__init__)."""
    ks = jax.random.split(key, 8)
    s = 1.0 / math.sqrt(hidden_size)

    def w(k):  # [in, out]
        return jax.random.uniform(k, (hidden_size, hidden_size), jnp.float32, -s, s)

    def b(k):  # kept 2-D [1, H] for TPU-friendly layout
        return jax.random.uniform(k, (1, hidden_size), jnp.float32, -s, s)

    return (w(ks[0]), b(ks[1]),   # query
            w(ks[2]), b(ks[3]),   # key
            w(ks[4]), b(ks[5]),   # value
            w(ks[6]), b(ks[7]))   # out


if __name__ == "__main__":
    B, S, H = 2, 8, 32            # hidden_size=32 -> num_attention_heads=4, head_dim=8
    num_heads = 1 if H in (11, 13, 17) else 4

    key = jax.random.PRNGKey(0)
    k_x, k_p = jax.random.split(key)
    x = jax.random.normal(k_x, (B, S, H), jnp.float32)
    params = init_params(k_p, H)

    ref = _reference(x, params, num_heads)

    # f32 MXU-operand path (matches the torch module; approx reciprocal ~1e-3 rel err).
    out_f32, weights = gatn_attention(x, params, num_heads)
    out_f32 = jax.block_until_ready(out_f32)
    assert out_f32.shape == (B, S, H)
    assert weights is None
    assert jnp.allclose(out_f32, ref, atol=1e-2, rtol=1e-2), "f32 kernel mismatch vs reference"

    # bf16 MXU-operand path (native MXU rate on v5e/v6e/v7x); f32 accumulation/softmax stats.
    out_bf16, _ = gatn_attention(x, params, num_heads, compute_dtype=jnp.bfloat16)
    out_bf16 = jax.block_until_ready(out_bf16)
    assert jnp.allclose(out_bf16.astype(jnp.float32), ref, atol=5e-2, rtol=5e-2), \
        "bf16 kernel mismatch vs reference"

    print("KERNEL_OK")
</pallas_src>

<mosaic_0001>
module attributes {stable_mosaic.version = 11 : i64} {
  func.func @kernel(%arg0: i32, %arg1: memref<2x8x32xf32, #tpu.memory_space<vmem>>, %arg2: memref<32x96xf32, #tpu.memory_space<vmem>>, %arg3: memref<1x96xf32, #tpu.memory_space<vmem>>, %arg4: memref<32x32xf32, #tpu.memory_space<vmem>>, %arg5: memref<1x32xf32, #tpu.memory_space<vmem>>, %arg6: memref<2x8x32xf32, #tpu.memory_space<vmem>>) attributes {dimension_semantics = [#tpu.dimension_semantics<parallel>], iteration_bounds = array<i64: 1>, scalar_prefetch = 0 : i64, scratch_operands = 0 : i64, tpu.core_type = #tpu.core_type<tc>, window_params = [{transform_indices = @transform_0, window_bounds = array<i64: 2, 8, 32>}, {pipeline_mode = #tpu.pipeline_mode<synchronous>, transform_indices = @transform_1, window_bounds = array<i64: 32, 96>}, {pipeline_mode = #tpu.pipeline_mode<synchronous>, transform_indices = @transform_2, window_bounds = array<i64: 1, 96>}, {pipeline_mode = #tpu.pipeline_mode<synchronous>, transform_indices = @transform_3, window_bounds = array<i64: 32, 32>}, {pipeline_mode = #tpu.pipeline_mode<synchronous>, transform_indices = @transform_4, window_bounds = array<i64: 1, 32>}, {transform_indices = @transform_5, window_bounds = array<i64: 2, 8, 32>}]} {
    %c0 = arith.constant 0 : index
    %c0_0 = arith.constant 0 : index
    %c0_1 = arith.constant 0 : index
    %0 = vector.load %arg1[%c0, %c0_0, %c0_1] : memref<2x8x32xf32, #tpu.memory_space<vmem>>, vector<2x8x32xf32>
    %1 = vector.shape_cast %0 : vector<2x8x32xf32> to vector<16x32xf32>
    %c0_2 = arith.constant 0 : index
    %c0_3 = arith.constant 0 : index
    %2 = vector.load %arg2[%c0_2, %c0_3] : memref<32x96xf32, #tpu.memory_space<vmem>>, vector<32x96xf32>
    %cst = arith.constant dense<0.000000e+00> : vector<16x96xf32>
    %3 = tpu.matmul %1, %2, %cst {dimension_numbers = #tpu.dot_dimension_numbers<[1], [0], [0], [1], [0, 0, 1, 1], [], []>} : vector<16x32xf32>, vector<32x96xf32>, vector<16x96xf32> -> vector<16x96xf32>
    %c0_4 = arith.constant 0 : index
    %c0_5 = arith.constant 0 : index
    %4 = vector.load %arg3[%c0_4, %c0_5] : memref<1x96xf32, #tpu.memory_space<vmem>>, vector<1x96xf32>
    %5 = vector.broadcast %4 : vector<1x96xf32> to vector<16x96xf32>
    %6 = arith.addf %3, %5 : vector<16x96xf32>
    %7 = vector.extract_strided_slice %6 {offsets = [0, 0], sizes = [16, 32], strides = [1, 1]} : vector<16x96xf32> to vector<16x32xf32>
    %8 = vector.extract_strided_slice %7 {offsets = [0, 0], sizes = [16, 8], strides = [1, 1]} : vector<16x32xf32> to vector<16x8xf32>
    %9 = vector.shape_cast %8 : vector<16x8xf32> to vector<2x1x8x8xf32>
    %10 = vector.extract_strided_slice %7 {offsets = [0, 8], sizes = [16, 8], strides = [1, 1]} : vector<16x32xf32> to vector<16x8xf32>
    %11 = vector.shape_cast %10 : vector<16x8xf32> to vector<2x1x8x8xf32>
    %12 = vector.extract_strided_slice %7 {offsets = [0, 16], sizes = [16, 8], strides = [1, 1]} : vector<16x32xf32> to vector<16x8xf32>
    %13 = vector.shape_cast %12 : vector<16x8xf32> to vector<2x1x8x8xf32>
    %14 = vector.extract_strided_slice %7 {offsets = [0, 24], sizes = [16, 8], strides = [1, 1]} : vector<16x32xf32> to vector<16x8xf32>
    %15 = vector.shape_cast %14 : vector<16x8xf32> to vector<2x1x8x8xf32>
    %16 = tpu.concatenate %9, %11, %13, %15 in 1 : vector<2x1x8x8xf32>, vector<2x1x8x8xf32>, vector<2x1x8x8xf32>, vector<2x1x8x8xf32> -> vector<2x4x8x8xf32>
    %17 = vector.shape_cast %16 : vector<2x4x8x8xf32> to vector<8x8x8xf32>
    %18 = vector.extract_strided_slice %6 {offsets = [0, 32], sizes = [16, 32], strides = [1, 1]} : vector<16x96xf32> to vector<16x32xf32>
    %19 = vector.extract_strided_slice %18 {offsets = [0, 0], sizes = [16, 8], strides = [1, 1]} : vector<16x32xf32> to vector<16x8xf32>
    %20 = vector.shape_cast %19 : vector<16x8xf32> to vector<2x1x8x8xf32>
    %21 = vector.extract_strided_slice %18 {offsets = [0, 8], sizes = [16, 8], strides = [1, 1]} : vector<16x32xf32> to vector<16x8xf32>
    %22 = vector.shape_cast %21 : vector<16x8xf32> to vector<2x1x8x8xf32>
    %23 = vector.extract_strided_slice %18 {offsets = [0, 16], sizes = [16, 8], strides = [1, 1]} : vector<16x32xf32> to vector<16x8xf32>
    %24 = vector.shape_cast %23 : vector<16x8xf32> to vector<2x1x8x8xf32>
    %25 = vector.extract_strided_slice %18 {offsets = [0, 24], sizes = [16, 8], strides = [1, 1]} : vector<16x32xf32> to vector<16x8xf32>
    %26 = vector.shape_cast %25 : vector<16x8xf32> to vector<2x1x8x8xf32>
    %27 = tpu.concatenate %20, %22, %24, %26 in 1 : vector<2x1x8x8xf32>, vector<2x1x8x8xf32>, vector<2x1x8x8xf32>, vector<2x1x8x8xf32> -> vector<2x4x8x8xf32>
    %28 = vector.shape_cast %27 : vector<2x4x8x8xf32> to vector<8x8x8xf32>
    %29 = vector.extract_strided_slice %6 {offsets = [0, 64], sizes = [16, 32], strides = [1, 1]} : vector<16x96xf32> to vector<16x32xf32>
    %30 = vector.extract_strided_slice %29 {offsets = [0, 0], sizes = [16, 8], strides = [1, 1]} : vector<16x32xf32> to vector<16x8xf32>
    %31 = vector.shape_cast %30 : vector<16x8xf32> to vector<2x1x8x8xf32>
    %32 = vector.extract_strided_slice %29 {offsets = [0, 8], sizes = [16, 8], strides = [1, 1]} : vector<16x32xf32> to vector<16x8xf32>
    %33 = vector.shape_cast %32 : vector<16x8xf32> to vector<2x1x8x8xf32>
    %34 = vector.extract_strided_slice %29 {offsets = [0, 16], sizes = [16, 8], strides = [1, 1]} : vector<16x32xf32> to vector<16x8xf32>
    %35 = vector.shape_cast %34 : vector<16x8xf32> to vector<2x1x8x8xf32>
    %36 = vector.extract_strided_slice %29 {offsets = [0, 24], sizes = [16, 8], strides = [1, 1]} : vector<16x32xf32> to vector<16x8xf32>
    %37 = vector.shape_cast %36 : vector<16x8xf32> to vector<2x1x8x8xf32>
    %38 = tpu.concatenate %31, %33, %35, %37 in 1 : vector<2x1x8x8xf32>, vector<2x1x8x8xf32>, vector<2x1x8x8xf32>, vector<2x1x8x8xf32> -> vector<2x4x8x8xf32>
    %39 = vector.shape_cast %38 : vector<2x4x8x8xf32> to vector<8x8x8xf32>
    "tpu.trace_start"() <{level = 10 : i32, message = "bqd,bkd->bqk"}> : () -> ()
    %cst_6 = arith.constant dense<0.000000e+00> : vector<8x8x8xf32>
    %40 = tpu.matmul %17, %28, %cst_6 {dimension_numbers = #tpu.dot_dimension_numbers<[2], [2], [1], [1], [0, 0, 0, 1, 1, 1], [0], [0]>} : vector<8x8x8xf32>, vector<8x8x8xf32>, vector<8x8x8xf32> -> vector<8x8x8xf32>
    "tpu.trace_stop"() : () -> ()
    %cst_7 = arith.constant dense<0xFF800000> : vector<8x8xf32>
    %41 = vector.multi_reduction <maximumf>, %40, %cst_7 [2] : vector<8x8x8xf32> to vector<8x8xf32>
    %42 = vector.shape_cast %41 : vector<8x8xf32> to vector<8x8x1xf32>
    %43 = vector.broadcast %42 : vector<8x8x1xf32> to vector<8x8x8xf32>
    %44 = arith.subf %40, %43 : vector<8x8x8xf32>
    %45 = math.exp %44 : vector<8x8x8xf32>
    %cst_8 = arith.constant dense<0.000000e+00> : vector<8x8xf32>
    %46 = vector.multi_reduction <add>, %45, %cst_8 [2] : vector<8x8x8xf32> to vector<8x8xf32>
    %47 = vector.shape_cast %46 : vector<8x8xf32> to vector<8x8x1xf32>
    %48 = tpu.reciprocal %47 {approx = true} : vector<8x8x1xf32> -> vector<8x8x1xf32>
    %49 = vector.broadcast %48 : vector<8x8x1xf32> to vector<8x8x8xf32>
    %50 = arith.mulf %45, %49 : vector<8x8x8xf32>
    "tpu.trace_start"() <{level = 10 : i32, message = "bqk,bkd->bqd"}> : () -> ()
    %cst_9 = arith.constant dense<0.000000e+00> : vector<8x8x8xf32>
    %51 = tpu.matmul %50, %39, %cst_9 {dimension_numbers = #tpu.dot_dimension_numbers<[2], [1], [1], [2], [0, 0, 0, 1, 1, 2], [0], [0]>} : vector<8x8x8xf32>, vector<8x8x8xf32>, vector<8x8x8xf32> -> vector<8x8x8xf32>
    "tpu.trace_stop"() : () -> ()
    %52 = vector.shape_cast %51 : vector<8x8x8xf32> to vector<2x4x8x8xf32>
    %53 = vector.extract_strided_slice %52 {offsets = [0, 0, 0, 0], sizes = [2, 1, 8, 8], strides = [1, 1, 1, 1]} : vector<2x4x8x8xf32> to vector<2x1x8x8xf32>
    %54 = vector.shape_cast %53 : vector<2x1x8x8xf32> to vector<2x8x8xf32>
    %55 = vector.extract_strided_slice %52 {offsets = [0, 1, 0, 0], sizes = [2, 1, 8, 8], strides = [1, 1, 1, 1]} : vector<2x4x8x8xf32> to vector<2x1x8x8xf32>
    %56 = vector.shape_cast %55 : vector<2x1x8x8xf32> to vector<2x8x8xf32>
    %57 = vector.extract_strided_slice %52 {offsets = [0, 2, 0, 0], sizes = [2, 1, 8, 8], strides = [1, 1, 1, 1]} : vector<2x4x8x8xf32> to vector<2x1x8x8xf32>
    %58 = vector.shape_cast %57 : vector<2x1x8x8xf32> to vector<2x8x8xf32>
    %59 = vector.extract_strided_slice %52 {offsets = [0, 3, 0, 0], sizes = [2, 1, 8, 8], strides = [1, 1, 1, 1]} : vector<2x4x8x8xf32> to vector<2x1x8x8xf32>
    %60 = vector.shape_cast %59 : vector<2x1x8x8xf32> to vector<2x8x8xf32>
    %61 = tpu.concatenate %54, %56, %58, %60 in 2 : vector<2x8x8xf32>, vector<2x8x8xf32>, vector<2x8x8xf32>, vector<2x8x8xf32> -> vector<2x8x32xf32>
    %62 = vector.shape_cast %61 : vector<2x8x32xf32> to vector<16x32xf32>
    %c0_10 = arith.constant 0 : index
    %c0_11 = arith.constant 0 : index
    %63 = vector.load %arg4[%c0_10, %c0_11] : memref<32x32xf32, #tpu.memory_space<vmem>>, vector<32x32xf32>
    %cst_12 = arith.constant dense<0.000000e+00> : vector<16x32xf32>
    %64 = tpu.matmul %62, %63, %cst_12 {dimension_numbers = #tpu.dot_dimension_numbers<[1], [0], [0], [1], [0, 0, 1, 1], [], []>} : vector<16x32xf32>, vector<32x32xf32>, vector<16x32xf32> -> vector<16x32xf32>
    %c0_13 = arith.constant 0 : index
    %c0_14 = arith.constant 0 : index
    %65 = vector.load %arg5[%c0_13, %c0_14] : memref<1x32xf32, #tpu.memory_space<vmem>>, vector<1x32xf32>
    %66 = vector.broadcast %65 : vector<1x32xf32> to vector<16x32xf32>
    %67 = arith.addf %64, %66 : vector<16x32xf32>
    %68 = vector.shape_cast %67 : vector<16x32xf32> to vector<2x8x32xf32>
    %c0_15 = arith.constant 0 : index
    %c0_16 = arith.constant 0 : index
    %c0_17 = arith.constant 0 : index
    %69 = vector.load %arg6[%c0_15, %c0_16, %c0_17] : memref<2x8x32xf32, #tpu.memory_space<vmem>>, vector<2x8x32xf32>
    tpu.vector_store %arg6[%c0_15, %c0_16, %c0_17], %68 {strides = array<i32>} : memref<2x8x32xf32, #tpu.memory_space<vmem>>, vector<2x8x32xf32>,
    return
  }
  func.func @transform_0(%arg0: i32) -> (i32, i32, i32) {
    %c0_i32 = arith.constant 0 : i32
    %c0_i32_0 = arith.constant 0 : i32
    %c0_i32_1 = arith.constant 0 : i32
    return %arg0, %c0_i32, %c0_i32_0 : i32, i32, i32
  }
  func.func @transform_1(%arg0: i32) -> (i32, i32) {
    %c0_i32 = arith.constant 0 : i32
    %c0_i32_0 = arith.constant 0 : i32
    %c0_i32_1 = arith.constant 0 : i32
    return %c0_i32, %c0_i32_0 : i32, i32
  }
  func.func @transform_2(%arg0: i32) -> (i32, i32) {
    %c0_i32 = arith.constant 0 : i32
    %c0_i32_0 = arith.constant 0 : i32
    %c0_i32_1 = arith.constant 0 : i32
    return %c0_i32, %c0_i32_0 : i32, i32
  }
  func.func @transform_3(%arg0: i32) -> (i32, i32) {
    %c0_i32 = arith.constant 0 : i32
    %c0_i32_0 = arith.constant 0 : i32
    %c0_i32_1 = arith.constant 0 : i32
    return %c0_i32, %c0_i32_0 : i32, i32
  }
  func.func @transform_4(%arg0: i32) -> (i32, i32) {
    %c0_i32 = arith.constant 0 : i32
    %c0_i32_0 = arith.constant 0 : i32
    %c0_i32_1 = arith.constant 0 : i32
    return %c0_i32, %c0_i32_0 : i32, i32
  }
  func.func @transform_5(%arg0: i32) -> (i32, i32, i32) {
    %c0_i32 = arith.constant 0 : i32
    %c0_i32_0 = arith.constant 0 : i32
    %c0_i32_1 = arith.constant 0 : i32
    return %arg0, %c0_i32, %c0_i32_0 : i32, i32, i32
  }
}

</mosaic_0001>

<llo_original>
// kernel: tpu_custom_call.1
$region0: #{tpu_custom_call.1}
  #allocation0 [shape = 'u32[]', space=smem, size = 0x4, offset = 0x4, fixed_abs, tag = 'smem constant byte address 0x4 - core index']
  #allocation1 [shape = 'u32[72,128]{1,0:T(1,128)}', space=vmem, size = 0x9000, scoped, tag = 'internal scratch']
  %s0 = inlined_call_operand.hbm [shape: f32[2,8,32], index: 0, kind: input, shape index: {}]
  %s1 = inlined_call_operand.hbm [shape: f32[32,96], index: 1, kind: input, shape index: {}]
  %s2 = inlined_call_operand.vmem [shape: f32[1,96], index: 2, kind: input, shape index: {}]
  %s3 = inlined_call_operand.hbm [shape: f32[32,32], index: 3, kind: input, shape index: {}]
  %s4 = inlined_call_operand.vmem [shape: f32[1,32], index: 4, kind: input, shape index: {}]
  %s5 = inlined_call_operand.hbm [shape: f32[2,8,32], index: 5, kind: output, shape index: {}]
  %s6 = sld [smem:[#allocation0]]
  $region42: #{tpu_custom_call.1} parent=0
    _
  %s8 = ssub.s32 1, %s6
  %s9 = scalar_select 0, %s8, %s6
  $region1: #{tpu_custom_call.1} parent=0
    #allocation2 [shape = 'u8[8192]{0}', space=vmem, size = 0x2000, scoped, tag = 'input window, operand 0, single buffered']
    #allocation3 [shape = 's32[1]{0}', space=sflag, size = 0x4, scoped, tag = 'scoped memory for tpu_custom_call.1']
    #allocation4 [shape = 's32[1]{0}', space=sflag, size = 0x4, scoped, tag = 'scoped memory for tpu_custom_call.1']
    #allocation5 [shape = 'u8[16384]{0}', space=vmem, size = 0x4000, scoped, tag = 'input window, operand 1, single buffered']
    #allocation6 [shape = 's32[1]{0}', space=sflag, size = 0x4, scoped, tag = 'scoped memory for tpu_custom_call.1']
    #allocation7 [shape = 'u8[16384]{0}', space=vmem, size = 0x4000, scoped, tag = 'input window, operand 3, single buffered']
    #allocation8 [shape = 'u8[8192]{0}', space=vmem, size = 0x2000, scoped, tag = 'output window, operand 0, single buffered']
    %10 = vsyncpa [#allocation3], 0
    %11 = vsyncpa [#allocation6], 0
    %12 = vsyncpa [#allocation4], 0
    // Predicated region
    $region2: #{tpu_custom_call.1} parent=1 // pred_check
      _
    $region3: #{tpu_custom_call.1} parent=1 // pred_check_branch
      %14 = sbr.rel (0) target = $region5
    $region4: #{tpu_custom_call.1} parent=1 // pred_region
      %16 = vsyncadd [#allocation3], 0
      %s17 = sshll.u32 %s0, 4
      %s18 = int_to_ptr.hbm [resolvable:$true] %s17
      %s19 = sshll.u32 [#allocation2], 4
      %s20 = int_to_ptr.vmem [resolvable:$true] %s19
      %25 = dma.hbm_to_vmem [thread:$0]  %s18, 256, %s20, [#allocation3], 128, 128, 8
    $region5: #{tpu_custom_call.1} parent=1 // pred_fallthru
      _
    // Predicated region
    $region6: #{tpu_custom_call.1} parent=1 // pred_check
      _
    $region7: #{tpu_custom_call.1} parent=1 // pred_check_branch
      %27 = sbr.rel (0) target = $region9
    $region8: #{tpu_custom_call.1} parent=1 // pred_region
      %29 = vsyncadd [#allocation6], 0
      %s30 = sshll.u32 %s1, 4
      %s31 = int_to_ptr.hbm [resolvable:$true] %s30
      %s32 = sshll.u32 [#allocation5], 4
      %s33 = int_to_ptr.vmem [resolvable:$true] %s32
      %38 = dma.hbm_to_vmem [thread:$0]  %s31, 512, %s33, [#allocation6], 128, 128, 8
    $region9: #{tpu_custom_call.1} parent=1 // pred_fallthru
      _
    // Predicated region
    $region10: #{tpu_custom_call.1} parent=1 // pred_check
      _
    $region11: #{tpu_custom_call.1} parent=1 // pred_check_branch
      %40 = sbr.rel (0) target = $region13
    $region12: #{tpu_custom_call.1} parent=1 // pred_region
      _
    $region13: #{tpu_custom_call.1} parent=1 // pred_fallthru
      _
    // Predicated region
    $region14: #{tpu_custom_call.1} parent=1 // pred_check
      _
    $region15: #{tpu_custom_call.1} parent=1 // pred_check_branch
      %42 = sbr.rel (0) target = $region17
    $region16: #{tpu_custom_call.1} parent=1 // pred_region
      %44 = vsyncadd [#allocation6], 0
      %s45 = sshll.u32 %s3, 4
      %s46 = int_to_ptr.hbm [resolvable:$true] %s45
      %s47 = sshll.u32 [#allocation7], 4
      %s48 = int_to_ptr.vmem [resolvable:$true] %s47
      %53 = dma.hbm_to_vmem [thread:$0]  %s46, 512, %s48, [#allocation6], 128, 128, 8
    $region17: #{tpu_custom_call.1} parent=1 // pred_fallthru
      _
    // Predicated region
    $region18: #{tpu_custom_call.1} parent=1 // pred_check
      _
    $region19: #{tpu_custom_call.1} parent=1 // pred_check_branch
      %55 = sbr.rel (0) target = $region21
    $region20: #{tpu_custom_call.1} parent=1 // pred_region
      _
    $region21: #{tpu_custom_call.1} parent=1 // pred_fallthru
      _
    // Predicated region
    $region22: #{tpu_custom_call.1} parent=1 // pred_check
      _
    $region23: #{tpu_custom_call.1} parent=1 // pred_check_branch
      %57 = sbr.rel (0) target = $region25
    $region24: #{tpu_custom_call.1} parent=1 // pred_region
      %59 = dma.done [#allocation3], 256
    $region25: #{tpu_custom_call.1} parent=1 // pred_fallthru
      _
    // Predicated region
    $region26: #{tpu_custom_call.1} parent=1 // pred_check
      _
    $region27: #{tpu_custom_call.1} parent=1 // pred_check_branch
      %61 = sbr.rel (0) target = $region29
    $region28: #{tpu_custom_call.1} parent=1 // pred_region
      %63 = dma.done [#allocation6], 512
    $region29: #{tpu_custom_call.1} parent=1 // pred_fallthru
      _
    // Predicated region
    $region30: #{tpu_custom_call.1} parent=1 // pred_check
      _
    $region31: #{tpu_custom_call.1} parent=1 // pred_check_branch
      %65 = sbr.rel (0) target = $region33
    $region32: #{tpu_custom_call.1} parent=1 // pred_region
      %67 = dma.done [#allocation6], 512
    $region33: #{tpu_custom_call.1} parent=1 // pred_fallthru
      _
    %v68 = vld [vmem:[#allocation2] sm:$0xff]
    %v69 = vld [vmem:[#allocation2 + $0x8] sm:$0xff]
    %v70 = vld [vmem:[#allocation5] sm:$0xff]
    %v71 = vld [vmem:[#allocation5 + $0x8] sm:$0xff]
    %v72 = vld [vmem:[#allocation5 + $0x10] sm:$0xff]
    %v73 = vld [vmem:[#allocation5 + $0x18] sm:$0xff]
    %v74 = vld [vmem:[%s2] sm:$0x1]
    %v76 = vperm.slane %v74, 0
    %vm78 = vcmask 261120
    %v80 = vsel %vm78, %v68, 0
    %v83 = vsel %vm78, %v69, 0
    %85 = vmatpush.msra.mxu0 0.0
    %86 = vmatpush.msra.mxu0 0.0
    %87 = vmatpush.msra.mxu0 0.0
    %88 = vmatpush.msra.mxu0 0.0
    %89 = vmatpush.msra.mxu0 0.0
    %90 = vmatpush.msra.mxu0 0.0
    %91 = vmatpush.msra.mxu0 0.0
    %92 = vmatpush.msra.mxu0 0.0
    %93 = vmatpush.msra.mxu0 0.0
    %94 = vmatpush.msra.mxu0 0.0
    %95 = vmatpush.msra.mxu0 0.0
    %96 = vmatpush.msra.mxu0 0.0
    %97 = vmatpush.msra.mxu0 %v73
    %98 = vmatpush.msra.mxu0 %v72
    %99 = vmatpush.msra.mxu0 %v71
    %100 = vmatpush.msra.mxu0 %v70
    %101 = vmatmul.f32.gmra.mxu0 %v80
    %v102 = vpop.f32.mrf.mxu0
    %v103 = vadd.f32 %v76, %v102
    %104 = vmatmul.f32.gmra.mxu0 %v83
    %v105 = vpop.f32.mrf.mxu0
    %v106 = vadd.f32 %v76, %v105
    %107 = vdwg.mxu0
    %110 = vrot.lane.b32.xlu0 %v103, 120
    %v111 = vpop.permute.xlu0 %110
    %112 = vrot.lane.b32.xlu0 %v106, 120
    %v113 = vpop.permute.xlu0 %112
    %114 = vrot.lane.b32.xlu0 %v103, 112
    %v115 = vpop.permute.xlu0 %114
    %116 = vrot.lane.b32.xlu0 %v106, 112
    %v117 = vpop.permute.xlu0 %116
    %118 = vrot.lane.b32.xlu0 %v103, 104
    %v119 = vpop.permute.xlu0 %118
    %120 = vrot.lane.b32.xlu0 %v106, 104
    %v121 = vpop.permute.xlu0 %120
    %122 = vrot.lane.b32.xlu0 %v103, 96
    %v123 = vpop.permute.xlu0 %122
    %vm124 = vcmask 64512
    %v125 = vsel %vm124, %v103, 0
    %v127 = vsel %vm124, %v123, 0
    %129 = vmatpush.xpose.msra.mxu0 0.0
    %130 = vmatpush.xpose.msra.mxu0 0.0
    %131 = vmatpush.xpose.msra.mxu0 0.0
    %132 = vmatpush.xpose.msra.mxu0 0.0
    %133 = vmatpush.xpose.msra.mxu0 0.0
    %134 = vmatpush.xpose.msra.mxu0 0.0
    %135 = vmatpush.xpose.msra.mxu0 0.0
    %136 = vmatpush.xpose.msra.mxu0 0.0
    %137 = vmatpush.xpose.msra.mxu0 0.0
    %138 = vmatpush.xpose.msra.mxu0 0.0
    %139 = vmatpush.xpose.msra.mxu0 0.0
    %140 = vmatpush.xpose.msra.mxu0 0.0
    %141 = vmatpush.xpose.msra.mxu0 0.0
    %142 = vmatpush.xpose.msra.mxu0 0.0
    %143 = vmatpush.xpose.msra.mxu0 0.0
    %144 = vmatpush.xpose.msra.mxu0 %v127
    %145 = vmatmul.f32.gmra.mxu0 %v125
    %v146 = vpop.f32.mrf.mxu0
    %v147 = vadd.f32 0.0, %v146
    %148 = vdwg.mxu0
    %149 = vrot.lane.b32.xlu0 %v111, 96
    %v150 = vpop.permute.xlu0 %149
    %v151 = vsel %vm124, %v111, 0
    %v153 = vsel %vm124, %v150, 0
    %155 = vmatpush.xpose.msra.mxu0 0.0
    %156 = vmatpush.xpose.msra.mxu0 0.0
    %157 = vmatpush.xpose.msra.mxu0 0.0
    %158 = vmatpush.xpose.msra.mxu0 0.0
    %159 = vmatpush.xpose.msra.mxu0 0.0
    %160 = vmatpush.xpose.msra.mxu0 0.0
    %161 = vmatpush.xpose.msra.mxu0 0.0
    %162 = vmatpush.xpose.msra.mxu0 0.0
    %163 = vmatpush.xpose.msra.mxu0 0.0
    %164 = vmatpush.xpose.msra.mxu0 0.0
    %165 = vmatpush.xpose.msra.mxu0 0.0
    %166 = vmatpush.xpose.msra.mxu0 0.0
    %167 = vmatpush.xpose.msra.mxu0 0.0
    %168 = vmatpush.xpose.msra.mxu0 0.0
    %169 = vmatpush.xpose.msra.mxu0 0.0
    %170 = vmatpush.xpose.msra.mxu0 %v153
    %171 = vmatmul.f32.gmra.mxu0 %v151
    %v172 = vpop.f32.mrf.mxu0
    %v173 = vadd.f32 0.0, %v172
    %174 = vdwg.mxu0
    %175 = vrot.lane.b32.xlu0 %v115, 96
    %v176 = vpop.permute.xlu0 %175
    %v177 = vsel %vm124, %v115, 0
    %v179 = vsel %vm124, %v176, 0
    %181 = vmatpush.xpose.msra.mxu0 0.0
    %182 = vmatpush.xpose.msra.mxu0 0.0
    %183 = vmatpush.xpose.msra.mxu0 0.0
    %184 = vmatpush.xpose.msra.mxu0 0.0
    %185 = vmatpush.xpose.msra.mxu0 0.0
    %186 = vmatpush.xpose.msra.mxu0 0.0
    %187 = vmatpush.xpose.msra.mxu0 0.0
    %188 = vmatpush.xpose.msra.mxu0 0.0
    %189 = vmatpush.xpose.msra.mxu0 0.0
    %190 = vmatpush.xpose.msra.mxu0 0.0
    %191 = vmatpush.xpose.msra.mxu0 0.0
    %192 = vmatpush.xpose.msra.mxu0 0.0
    %193 = vmatpush.xpose.msra.mxu0 0.0
    %194 = vmatpush.xpose.msra.mxu0 0.0
    %195 = vmatpush.xpose.msra.mxu0 0.0
    %196 = vmatpush.xpose.msra.mxu0 %v179
    %197 = vmatmul.f32.gmra.mxu0 %v177
    %v198 = vpop.f32.mrf.mxu0
    %v199 = vadd.f32 0.0, %v198
    %200 = vdwg.mxu0
    %201 = vrot.lane.b32.xlu0 %v119, 96
    %v202 = vpop.permute.xlu0 %201
    %v203 = vsel %vm124, %v119, 0
    %v205 = vsel %vm124, %v202, 0
    %207 = vmatpush.xpose.msra.mxu0 0.0
    %208 = vmatpush.xpose.msra.mxu0 0.0
    %209 = vmatpush.xpose.msra.mxu0 0.0
    %210 = vmatpush.xpose.msra.mxu0 0.0
    %211 = vmatpush.xpose.msra.mxu0 0.0
    %212 = vmatpush.xpose.msra.mxu0 0.0
    %213 = vmatpush.xpose.msra.mxu0 0.0
    %214 = vmatpush.xpose.msra.mxu0 0.0
    %215 = vmatpush.xpose.msra.mxu0 0.0
    %216 = vmatpush.xpose.msra.mxu0 0.0
    %217 = vmatpush.xpose.msra.mxu0 0.0
    %218 = vmatpush.xpose.msra.mxu0 0.0
    %219 = vmatpush.xpose.msra.mxu0 0.0
    %220 = vmatpush.xpose.msra.mxu0 0.0
    %221 = vmatpush.xpose.msra.mxu0 0.0
    %222 = vmatpush.xpose.msra.mxu0 %v205
    %223 = vmatmul.f32.gmra.mxu0 %v203
    %v224 = vpop.f32.mrf.mxu0
    %v225 = vadd.f32 0.0, %v224
    %226 = vdwg.mxu0
    %227 = vrot.lane.b32.xlu0 %v106, 96
    %v228 = vpop.permute.xlu0 %227
    %v229 = vsel %vm124, %v106, 0
    %v231 = vsel %vm124, %v228, 0
    %233 = vmatpush.xpose.msra.mxu0 0.0
    %234 = vmatpush.xpose.msra.mxu0 0.0
    %235 = vmatpush.xpose.msra.mxu0 0.0
    %236 = vmatpush.xpose.msra.mxu0 0.0
    %237 = vmatpush.xpose.msra.mxu0 0.0
    %238 = vmatpush.xpose.msra.mxu0 0.0
    %239 = vmatpush.xpose.msra.mxu0 0.0
    %240 = vmatpush.xpose.msra.mxu0 0.0
    %241 = vmatpush.xpose.msra.mxu0 0.0
    %242 = vmatpush.xpose.msra.mxu0 0.0
    %243 = vmatpush.xpose.msra.mxu0 0.0
    %244 = vmatpush.xpose.msra.mxu0 0.0
    %245 = vmatpush.xpose.msra.mxu0 0.0
    %246 = vmatpush.xpose.msra.mxu0 0.0
    %247 = vmatpush.xpose.msra.mxu0 0.0
    %248 = vmatpush.xpose.msra.mxu0 %v231
    %249 = vmatmul.f32.gmra.mxu0 %v229
    %v250 = vpop.f32.mrf.mxu0
    %v251 = vadd.f32 0.0, %v250
    %252 = vdwg.mxu0
    %253 = vrot.lane.b32.xlu0 %v113, 96
    %v254 = vpop.permute.xlu0 %253
    %v255 = vsel %vm124, %v113, 0
    %v257 = vsel %vm124, %v254, 0
    %259 = vmatpush.xpose.msra.mxu0 0.0
    %260 = vmatpush.xpose.msra.mxu0 0.0
    %261 = vmatpush.xpose.msra.mxu0 0.0
    %262 = vmatpush.xpose.msra.mxu0 0.0
    %263 = vmatpush.xpose.msra.mxu0 0.0
    %264 = vmatpush.xpose.msra.mxu0 0.0
    %265 = vmatpush.xpose.msra.mxu0 0.0
    %266 = vmatpush.xpose.msra.mxu0 0.0
    %267 = vmatpush.xpose.msra.mxu0 0.0
    %268 = vmatpush.xpose.msra.mxu0 0.0
    %269 = vmatpush.xpose.msra.mxu0 0.0
    %270 = vmatpush.xpose.msra.mxu0 0.0
    %271 = vmatpush.xpose.msra.mxu0 0.0
    %272 = vmatpush.xpose.msra.mxu0 0.0
    %273 = vmatpush.xpose.msra.mxu0 0.0
    %274 = vmatpush.xpose.msra.mxu0 %v257
    %275 = vmatmul.f32.gmra.mxu0 %v255
    %v276 = vpop.f32.mrf.mxu0
    %v277 = vadd.f32 0.0, %v276
    %278 = vdwg.mxu0
    %279 = vrot.lane.b32.xlu0 %v117, 96
    %v280 = vpop.permute.xlu0 %279
    %v281 = vsel %vm124, %v117, 0
    %v283 = vsel %vm124, %v280, 0
    %285 = vmatpush.xpose.msra.mxu0 0.0
    %286 = vmatpush.xpose.msra.mxu0 0.0
    %287 = vmatpush.xpose.msra.mxu0 0.0
    %288 = vmatpush.xpose.msra.mxu0 0.0
    %289 = vmatpush.xpose.msra.mxu0 0.0
    %290 = vmatpush.xpose.msra.mxu0 0.0
    %291 = vmatpush.xpose.msra.mxu0 0.0
    %292 = vmatpush.xpose.msra.mxu0 0.0
    %293 = vmatpush.xpose.msra.mxu0 0.0
    %294 = vmatpush.xpose.msra.mxu0 0.0
    %295 = vmatpush.xpose.msra.mxu0 0.0
    %296 = vmatpush.xpose.msra.mxu0 0.0
    %297 = vmatpush.xpose.msra.mxu0 0.0
    %298 = vmatpush.xpose.msra.mxu0 0.0
    %299 = vmatpush.xpose.msra.mxu0 0.0
    %300 = vmatpush.xpose.msra.mxu0 %v283
    %301 = vmatmul.f32.gmra.mxu0 %v281
    %v302 = vpop.f32.mrf.mxu0
    %v303 = vadd.f32 0.0, %v302
    %304 = vdwg.mxu0
    %305 = vrot.lane.b32.xlu0 %v121, 96
    %v306 = vpop.permute.xlu0 %305
    %v307 = vsel %vm124, %v121, 0
    %v309 = vsel %vm124, %v306, 0
    %311 = vmatpush.xpose.msra.mxu0 0.0
    %312 = vmatpush.xpose.msra.mxu0 0.0
    %313 = vmatpush.xpose.msra.mxu0 0.0
    %314 = vmatpush.xpose.msra.mxu0 0.0
    %315 = vmatpush.xpose.msra.mxu0 0.0
    %316 = vmatpush.xpose.msra.mxu0 0.0
    %317 = vmatpush.xpose.msra.mxu0 0.0
    %318 = vmatpush.xpose.msra.mxu0 0.0
    %319 = vmatpush.xpose.msra.mxu0 0.0
    %320 = vmatpush.xpose.msra.mxu0 0.0
    %321 = vmatpush.xpose.msra.mxu0 0.0
    %322 = vmatpush.xpose.msra.mxu0 0.0
    %323 = vmatpush.xpose.msra.mxu0 0.0
    %324 = vmatpush.xpose.msra.mxu0 0.0
    %325 = vmatpush.xpose.msra.mxu0 0.0
    %326 = vmatpush.xpose.msra.mxu0 %v309
    %327 = vmatmul.f32.gmra.mxu0 %v307
    %v328 = vpop.f32.mrf.mxu0
    %v329 = vadd.f32 0.0, %v328
    %330 = vdwg.mxu0
    %v331 = vsel %vm124, %v147, -inf
    %332 = vmax.xlane.f32.xlu0 %v331
    %v333 = vpop.xlane.xlu0 %332
    %v334 = vsel %vm124, %v173, -inf
    %335 = vmax.xlane.f32.xlu0 %v334
    %v336 = vpop.xlane.xlu0 %335
    %v337 = vsel %vm124, %v199, -inf
    %338 = vmax.xlane.f32.xlu0 %v337
    %v339 = vpop.xlane.xlu0 %338
    %v340 = vsel %vm124, %v225, -inf
    %341 = vmax.xlane.f32.xlu0 %v340
    %v342 = vpop.xlane.xlu0 %341
    %v343 = vsel %vm124, %v251, -inf
    %344 = vmax.xlane.f32.xlu0 %v343
    %v345 = vpop.xlane.xlu0 %344
    %v346 = vsel %vm124, %v277, -inf
    %347 = vmax.xlane.f32.xlu0 %v346
    %v348 = vpop.xlane.xlu0 %347
    %v349 = vsel %vm124, %v303, -inf
    %350 = vmax.xlane.f32.xlu0 %v349
    %v351 = vpop.xlane.xlu0 %350
    %v352 = vsel %vm124, %v329, -inf
    %353 = vmax.xlane.f32.xlu0 %v352
    %v354 = vpop.xlane.xlu0 %353
    %v355 = vsub.f32 %v147, %v333
    %v356 = vsub.f32 %v173, %v336
    %v357 = vsub.f32 %v199, %v339
    %v358 = vsub.f32 %v225, %v342
    %v359 = vsub.f32 %v251, %v345
    %v360 = vsub.f32 %v277, %v348
    %v361 = vsub.f32 %v303, %v351
    %v362 = vsub.f32 %v329, %v354
    %v363 = vmul.f32 %v355, 1.442695
    %v364 = vpow.pop %v363
    %v365 = vmul.f32 %v356, 1.442695
    %v366 = vpow.pop %v365
    %v367 = vmul.f32 %v357, 1.442695
    %v368 = vpow.pop %v367
    %v369 = vmul.f32 %v358, 1.442695
    %v370 = vpow.pop %v369
    %v371 = vmul.f32 %v359, 1.442695
    %v372 = vpow.pop %v371
    %v373 = vmul.f32 %v360, 1.442695
    %v374 = vpow.pop %v373
    %v375 = vmul.f32 %v361, 1.442695
    %v376 = vpow.pop %v375
    %v377 = vmul.f32 %v362, 1.442695
    %v378 = vpow.pop %v377
    %v379 = vsel %vm124, %v364, 0.0
    %380 = vadd.xlane.f32.xlu0 %v379
    %v381 = vpop.xlane.xlu0 %380
    %v382 = vsel %vm124, %v366, 0.0
    %383 = vadd.xlane.f32.xlu0 %v382
    %v384 = vpop.xlane.xlu0 %383
    %v385 = vsel %vm124, %v368, 0.0
    %386 = vadd.xlane.f32.xlu0 %v385
    %v387 = vpop.xlane.xlu0 %386
    %v388 = vsel %vm124, %v370, 0.0
    %389 = vadd.xlane.f32.xlu0 %v388
    %v390 = vpop.xlane.xlu0 %389
    %v391 = vsel %vm124, %v372, 0.0
    %392 = vadd.xlane.f32.xlu0 %v391
    %v393 = vpop.xlane.xlu0 %392
    %v394 = vsel %vm124, %v374, 0.0
    %395 = vadd.xlane.f32.xlu0 %v394
    %v396 = vpop.xlane.xlu0 %395
    %v397 = vsel %vm124, %v376, 0.0
    %398 = vadd.xlane.f32.xlu0 %v397
    %v399 = vpop.xlane.xlu0 %398
    %v400 = vsel %vm124, %v378, 0.0
    %401 = vadd.xlane.f32.xlu0 %v400
    %v402 = vpop.xlane.xlu0 %401
    %v403 = vrcp.pop %v381
    %v404 = vrcp.pop %v384
    %v405 = vrcp.pop %v387
    %v406 = vrcp.pop %v390
    %v407 = vrcp.pop %v393
    %v408 = vrcp.pop %v396
    %v409 = vrcp.pop %v399
    %v410 = vrcp.pop %v402
    %v411 = vmul.f32 %v364, %v403
    %v412 = vmul.f32 %v366, %v404
    %v413 = vmul.f32 %v368, %v405
    %v414 = vmul.f32 %v370, %v406
    %v415 = vmul.f32 %v372, %v407
    %v416 = vmul.f32 %v374, %v408
    %v417 = vmul.f32 %v376, %v409
    %v418 = vmul.f32 %v378, %v410
    %419 = vrot.lane.b32.xlu0 %v103, 64
    %v420 = vpop.permute.xlu0 %419
    %v423 = vsel %vm124, %v411, 0
    %425 = vmatpush.msra.mxu0 0.0
    %426 = vmatpush.msra.mxu0 0.0
    %427 = vmatpush.msra.mxu0 0.0
    %428 = vmatpush.msra.mxu0 0.0
    %429 = vmatpush.msra.mxu0 0.0
    %430 = vmatpush.msra.mxu0 0.0
    %431 = vmatpush.msra.mxu0 0.0
    %432 = vmatpush.msra.mxu0 0.0
    %433 = vmatpush.msra.mxu0 0.0
    %434 = vmatpush.msra.mxu0 0.0
    %435 = vmatpush.msra.mxu0 0.0
    %436 = vmatpush.msra.mxu0 0.0
    %437 = vmatpush.msra.mxu0 0.0
    %438 = vmatpush.msra.mxu0 0.0
    %439 = vmatpush.msra.mxu0 0.0
    %440 = vmatpush.msra.mxu0 %v420
    %441 = vmatmul.f32.gmra.mxu0 %v423
    %v442 = vpop.f32.mrf.mxu0
    %v443 = vadd.f32 0.0, %v442
    %444 = vdwg.mxu0
    %445 = vrot.lane.b32.xlu0 %v111, 64
    %v446 = vpop.permute.xlu0 %445
    %v449 = vsel %vm124, %v412, 0
    %451 = vmatpush.msra.mxu0 0.0
    %452 = vmatpush.msra.mxu0 0.0
    %453 = vmatpush.msra.mxu0 0.0
    %454 = vmatpush.msra.mxu0 0.0
    %455 = vmatpush.msra.mxu0 0.0
    %456 = vmatpush.msra.mxu0 0.0
    %457 = vmatpush.msra.mxu0 0.0
    %458 = vmatpush.msra.mxu0 0.0
    %459 = vmatpush.msra.mxu0 0.0
    %460 = vmatpush.msra.mxu0 0.0
    %461 = vmatpush.msra.mxu0 0.0
    %462 = vmatpush.msra.mxu0 0.0
    %463 = vmatpush.msra.mxu0 0.0
    %464 = vmatpush.msra.mxu0 0.0
    %465 = vmatpush.msra.mxu0 0.0
    %466 = vmatpush.msra.mxu0 %v446
    %467 = vmatmul.f32.gmra.mxu0 %v449
    %v468 = vpop.f32.mrf.mxu0
    %v469 = vadd.f32 0.0, %v468
    %470 = vdwg.mxu0
    %471 = vrot.lane.b32.xlu0 %v115, 64
    %v472 = vpop.permute.xlu0 %471
    %v475 = vsel %vm124, %v413, 0
    %477 = vmatpush.msra.mxu0 0.0
    %478 = vmatpush.msra.mxu0 0.0
    %479 = vmatpush.msra.mxu0 0.0
    %480 = vmatpush.msra.mxu0 0.0
    %481 = vmatpush.msra.mxu0 0.0
    %482 = vmatpush.msra.mxu0 0.0
    %483 = vmatpush.msra.mxu0 0.0
    %484 = vmatpush.msra.mxu0 0.0
    %485 = vmatpush.msra.mxu0 0.0
    %486 = vmatpush.msra.mxu0 0.0
    %487 = vmatpush.msra.mxu0 0.0
    %488 = vmatpush.msra.mxu0 0.0
    %489 = vmatpush.msra.mxu0 0.0
    %490 = vmatpush.msra.mxu0 0.0
    %491 = vmatpush.msra.mxu0 0.0
    %492 = vmatpush.msra.mxu0 %v472
    %493 = vmatmul.f32.gmra.mxu0 %v475
    %v494 = vpop.f32.mrf.mxu0
    %v495 = vadd.f32 0.0, %v494
    %496 = vdwg.mxu0
    %497 = vrot.lane.b32.xlu0 %v119, 64
    %v498 = vpop.permute.xlu0 %497
    %v501 = vsel %vm124, %v414, 0
    %503 = vmatpush.msra.mxu0 0.0
    %504 = vmatpush.msra.mxu0 0.0
    %505 = vmatpush.msra.mxu0 0.0
    %506 = vmatpush.msra.mxu0 0.0
    %507 = vmatpush.msra.mxu0 0.0
    %508 = vmatpush.msra.mxu0 0.0
    %509 = vmatpush.msra.mxu0 0.0
    %510 = vmatpush.msra.mxu0 0.0
    %511 = vmatpush.msra.mxu0 0.0
    %512 = vmatpush.msra.mxu0 0.0
    %513 = vmatpush.msra.mxu0 0.0
    %514 = vmatpush.msra.mxu0 0.0
    %515 = vmatpush.msra.mxu0 0.0
    %516 = vmatpush.msra.mxu0 0.0
    %517 = vmatpush.msra.mxu0 0.0
    %518 = vmatpush.msra.mxu0 %v498
    %519 = vmatmul.f32.gmra.mxu0 %v501
    %v520 = vpop.f32.mrf.mxu0
    %v521 = vadd.f32 0.0, %v520
    %522 = vdwg.mxu0
    %523 = vrot.lane.b32.xlu0 %v106, 64
    %v524 = vpop.permute.xlu0 %523
    %v527 = vsel %vm124, %v415, 0
    %529 = vmatpush.msra.mxu0 0.0
    %530 = vmatpush.msra.mxu0 0.0
    %531 = vmatpush.msra.mxu0 0.0
    %532 = vmatpush.msra.mxu0 0.0
    %533 = vmatpush.msra.mxu0 0.0
    %534 = vmatpush.msra.mxu0 0.0
    %535 = vmatpush.msra.mxu0 0.0
    %536 = vmatpush.msra.mxu0 0.0
    %537 = vmatpush.msra.mxu0 0.0
    %538 = vmatpush.msra.mxu0 0.0
    %539 = vmatpush.msra.mxu0 0.0
    %540 = vmatpush.msra.mxu0 0.0
    %541 = vmatpush.msra.mxu0 0.0
    %542 = vmatpush.msra.mxu0 0.0
    %543 = vmatpush.msra.mxu0 0.0
    %544 = vmatpush.msra.mxu0 %v524
    %545 = vmatmul.f32.gmra.mxu0 %v527
    %v546 = vpop.f32.mrf.mxu0
    %v547 = vadd.f32 0.0, %v546
    %548 = vdwg.mxu0
    %549 = vrot.lane.b32.xlu0 %v113, 64
    %v550 = vpop.permute.xlu0 %549
    %v553 = vsel %vm124, %v416, 0
    %555 = vmatpush.msra.mxu0 0.0
    %556 = vmatpush.msra.mxu0 0.0
    %557 = vmatpush.msra.mxu0 0.0
    %558 = vmatpush.msra.mxu0 0.0
    %559 = vmatpush.msra.mxu0 0.0
    %560 = vmatpush.msra.mxu0 0.0
    %561 = vmatpush.msra.mxu0 0.0
    %562 = vmatpush.msra.mxu0 0.0
    %563 = vmatpush.msra.mxu0 0.0
    %564 = vmatpush.msra.mxu0 0.0
    %565 = vmatpush.msra.mxu0 0.0
    %566 = vmatpush.msra.mxu0 0.0
    %567 = vmatpush.msra.mxu0 0.0
    %568 = vmatpush.msra.mxu0 0.0
    %569 = vmatpush.msra.mxu0 0.0
    %570 = vmatpush.msra.mxu0 %v550
    %571 = vmatmul.f32.gmra.mxu0 %v553
    %v572 = vpop.f32.mrf.mxu0
    %v573 = vadd.f32 0.0, %v572
    %574 = vdwg.mxu0
    %575 = vrot.lane.b32.xlu0 %v117, 64
    %v576 = vpop.permute.xlu0 %575
    %v579 = vsel %vm124, %v417, 0
    %581 = vmatpush.msra.mxu0 0.0
    %582 = vmatpush.msra.mxu0 0.0
    %583 = vmatpush.msra.mxu0 0.0
    %584 = vmatpush.msra.mxu0 0.0
    %585 = vmatpush.msra.mxu0 0.0
    %586 = vmatpush.msra.mxu0 0.0
    %587 = vmatpush.msra.mxu0 0.0
    %588 = vmatpush.msra.mxu0 0.0
    %589 = vmatpush.msra.mxu0 0.0
    %590 = vmatpush.msra.mxu0 0.0
    %591 = vmatpush.msra.mxu0 0.0
    %592 = vmatpush.msra.mxu0 0.0
    %593 = vmatpush.msra.mxu0 0.0
    %594 = vmatpush.msra.mxu0 0.0
    %595 = vmatpush.msra.mxu0 0.0
    %596 = vmatpush.msra.mxu0 %v576
    %597 = vmatmul.f32.gmra.mxu0 %v579
    %v598 = vpop.f32.mrf.mxu0
    %v599 = vadd.f32 0.0, %v598
    %600 = vdwg.mxu0
    %601 = vrot.lane.b32.xlu0 %v121, 64
    %v602 = vpop.permute.xlu0 %601
    %v605 = vsel %vm124, %v418, 0
    %607 = vmatpush.msra.mxu0 0.0
    %608 = vmatpush.msra.mxu0 0.0
    %609 = vmatpush.msra.mxu0 0.0
    %610 = vmatpush.msra.mxu0 0.0
    %611 = vmatpush.msra.mxu0 0.0
    %612 = vmatpush.msra.mxu0 0.0
    %613 = vmatpush.msra.mxu0 0.0
    %614 = vmatpush.msra.mxu0 0.0
    %615 = vmatpush.msra.mxu0 0.0
    %616 = vmatpush.msra.mxu0 0.0
    %617 = vmatpush.msra.mxu0 0.0
    %618 = vmatpush.msra.mxu0 0.0
    %619 = vmatpush.msra.mxu0 0.0
    %620 = vmatpush.msra.mxu0 0.0
    %621 = vmatpush.msra.mxu0 0.0
    %622 = vmatpush.msra.mxu0 %v602
    %623 = vmatmul.f32.gmra.mxu0 %v605
    %v624 = vpop.f32.mrf.mxu0
    %v625 = vadd.f32 0.0, %v624
    %626 = vdwg.mxu0
    %629 = vrot.lane.b32.xlu0 %v469, 8
    %v630 = vpop.permute.xlu0 %629
    %631 = vrot.lane.b32.xlu0 %v573, 8
    %v632 = vpop.permute.xlu0 %631
    %637 = vrot.lane.b32.xlu0 %v495, 16
    %v638 = vpop.permute.xlu0 %637
    %639 = vrot.lane.b32.xlu0 %v599, 16
    %v640 = vpop.permute.xlu0 %639
    %645 = vrot.lane.b32.xlu0 %v521, 24
    %v646 = vpop.permute.xlu0 %645
    %647 = vrot.lane.b32.xlu0 %v625, 24
    %v648 = vpop.permute.xlu0 %647
    %v651 = vsel %vm124, %v443, %v630
    %v652 = vsel %vm124, %v547, %v632
    %vm653 = vcmask 130048
    %v654 = vsel %vm653, %v651, %v638
    %v655 = vsel %vm653, %v652, %v640
    %vm656 = vcmask 195584
    %v657 = vsel %vm656, %v654, %v646
    %v658 = vsel %vm656, %v655, %v648
    %v659 = vld [vmem:[#allocation7] sm:$0xff]
    %v660 = vld [vmem:[#allocation7 + $0x8] sm:$0xff]
    %v661 = vld [vmem:[#allocation7 + $0x10] sm:$0xff]
    %v662 = vld [vmem:[#allocation7 + $0x18] sm:$0xff]
    %v663 = vld [vmem:[%s4] sm:$0x1]
    %v665 = vperm.slane %v663, 0
    %v668 = vsel %vm78, %v657, 0
    %v671 = vsel %vm78, %v658, 0
    %673 = vmatpush.msra.mxu0 0.0
    %674 = vmatpush.msra.mxu0 0.0
    %675 = vmatpush.msra.mxu0 0.0
    %676 = vmatpush.msra.mxu0 0.0
    %677 = vmatpush.msra.mxu0 0.0
    %678 = vmatpush.msra.mxu0 0.0
    %679 = vmatpush.msra.mxu0 0.0
    %680 = vmatpush.msra.mxu0 0.0
    %681 = vmatpush.msra.mxu0 0.0
    %682 = vmatpush.msra.mxu0 0.0
    %683 = vmatpush.msra.mxu0 0.0
    %684 = vmatpush.msra.mxu0 0.0
    %685 = vmatpush.msra.mxu0 %v662
    %686 = vmatpush.msra.mxu0 %v661
    %687 = vmatpush.msra.mxu0 %v660
    %688 = vmatpush.msra.mxu0 %v659
    %689 = vmatmul.f32.gmra.mxu0 %v668
    %v690 = vpop.f32.mrf.mxu0
    %v691 = vadd.f32 %v665, %v690
    %692 = vmatmul.f32.gmra.mxu0 %v671
    %v693 = vpop.f32.mrf.mxu0
    %v694 = vadd.f32 %v665, %v693
    %695 = vdwg.mxu0
    %696 = vst.msk [vmem:[#allocation8] sm:$0xff] %vm78, %v691
    %697 = vst.msk [vmem:[#allocation8 + $0x8] sm:$0xff] %vm78, %v694
    // Predicated region
    $region34: #{tpu_custom_call.1} parent=1 // pred_check
      _
    $region35: #{tpu_custom_call.1} parent=1 // pred_check_branch
      %699 = sbr.rel (0) target = $region37
    $region36: #{tpu_custom_call.1} parent=1 // pred_region
      %701 = vsyncadd [#allocation4], 0
      %s702 = sshll.u32 [#allocation8], 4
      %s703 = int_to_ptr.vmem [resolvable:$true] %s702
      %s704 = sshll.u32 %s5, 4
      %s705 = int_to_ptr.hbm [resolvable:$true] %s704
      %710 = dma.vmem_to_hbm [thread:$0]  %s703, 256, %s705, [#allocation4], 128, 128, 8
    $region37: #{tpu_custom_call.1} parent=1 // pred_fallthru
      _
    // Predicated region
    $region38: #{tpu_custom_call.1} parent=1 // pred_check
      _
    $region39: #{tpu_custom_call.1} parent=1 // pred_check_branch
      %712 = sbr.rel (0) target = $region41
    $region40: #{tpu_custom_call.1} parent=1 // pred_region
      %714 = dma.done [#allocation4], 256
    $region41: #{tpu_custom_call.1} parent=1 // pred_fallthru
      _
    %715 = vsyncpa [#allocation3], 1
    %716 = vsyncpa [#allocation6], 1
    %717 = vsyncpa [#allocation4], 1

</llo_original>
